<compile_context>
chip_gen: v7x
topology: tpu7x:2x2x1
jax: 0.10.0
libtpu: 0.0.40
codegen_flags: <defaults>
</compile_context>

<pallas_src>
import functools

import jax
import jax.numpy as jnp
from jax.experimental import pallas as pl
from jax.experimental.pallas import tpu as pltpu

_MAX_LANES = 1024                        # widest lane-dense slab (8 vregs wide)
_TARGET_BLOCK_BYTES = 4 * 1024 * 1024    # ~4 MiB per input per pipeline buffer


def _cdiv(a, b):
    return -(-a // b)


def _round_up(a, b):
    return _cdiv(a, b) * b


def _js_kernel(p_ref, q_ref, out_ref, *, eps, n, lanes):
    br = p_ref.shape[0]
    # Mask for the ragged last block (and any in-array tail padding):
    # element is valid iff its flat index < n.  Everything else (including
    # Pallas' unspecified out-of-bounds rows) is forced to contribute 0.
    base = pl.program_id(0) * (br * lanes)
    row = jax.lax.broadcasted_iota(jnp.int32, (br, lanes), 0)
    col = jax.lax.broadcasted_iota(jnp.int32, (br, lanes), 1)
    valid = (base + row * lanes + col) < n

    p = p_ref[...].astype(jnp.float32) + eps
    q = q_ref[...].astype(jnp.float32) + eps
    # 2/(p+q) == 1/m ; exact reciprocal (EUP) + a power-of-two scale.
    inv_m = pl.reciprocal(p + q, approx=False) * 2.0
    # integrand: p*(log p - log m) + q*(log q - log m)
    v = p * jnp.log(p * inv_m) + q * jnp.log(q * inv_m)
    v = jnp.where(valid, v, 0.0)

    # Per-block lane-wide partial sum (cross-sublane reduce only).
    out_ref[...] = jnp.sum(v, axis=0, keepdims=True)[None]


def js_divergence(p, q, *, eps=1e-8):
    """JS divergence (batchmean over dim 0) of two tensors of equal shape.

    Inputs may be any rank and stay in their native dtype (e.g. bf16) in HBM;
    the kernel upcasts in-register.  Returns a float32 scalar.
    """
    assert p.shape == q.shape, (p.shape, q.shape)
    batch = p.shape[0]
    n = int(p.size)
    itemsize = p.dtype.itemsize

    # Widest lane width that makes reshape(-1, L) a free (copy-less) bitcast.
    lanes = None
    for cand in (1024, 512, 256, 128):
        if n % cand == 0:
            lanes = cand
            break

    if lanes is not None:
        p2 = p.reshape(-1, lanes)
        q2 = q.reshape(-1, lanes)
    else:
        # TODO(synk): n not a multiple of 128 — pad the flat tail to one slab
        # row (this is the only case that still materializes a copy).
        lanes = _MAX_LANES
        n_pad = _round_up(n, lanes)
        p2 = jnp.pad(p.reshape(-1), (0, n_pad - n)).reshape(-1, lanes)
        q2 = jnp.pad(q.reshape(-1), (0, n_pad - n)).reshape(-1, lanes)

    r0 = p2.shape[0]

    # dtype-aware block rows (~4 MiB per input per buffer), multiple of 8.
    br_max = max(_TARGET_BLOCK_BYTES // (lanes * itemsize), 8)
    num_blocks = _cdiv(r0, br_max)

    # v7x megacore: prefer an even block count so both TensorCores get work,
    # but only if every block still overlaps the array (>=1 valid row each).
    if num_blocks % 2 == 1:
        nb_even = num_blocks + 1
        br_even = _round_up(_cdiv(r0, nb_even), 8)
        if (nb_even - 1) * br_even < r0:
            num_blocks = nb_even
    br = _round_up(_cdiv(r0, num_blocks), 8)

    kernel = functools.partial(_js_kernel, eps=float(eps), n=n, lanes=lanes)

    partials = pl.pallas_call(
        kernel,
        out_shape=jax.ShapeDtypeStruct((num_blocks, 1, lanes), jnp.float32),
        grid_spec=pltpu.PrefetchScalarGridSpec(
            num_scalar_prefetch=0,
            grid=(num_blocks,),
            in_specs=[
                pl.BlockSpec((br, lanes), lambda i: (i, 0)),
                pl.BlockSpec((br, lanes), lambda i: (i, 0)),
            ],
            out_specs=pl.BlockSpec((1, 1, lanes), lambda i: (i, 0, 0)),
        ),
        compiler_params=pltpu.CompilerParams(
            dimension_semantics=("parallel",),
            vmem_limit_bytes=48 * 1024 * 1024,
        ),
    )(p2, q2)

    # Tiny final reduction (num_blocks * lanes floats) + batchmean scale.
    return jnp.sum(partials) * (0.5 / batch)


def _js_reference(p, q, eps=1e-8):
    batch = p.shape[0]
    p = p.astype(jnp.float32) + eps
    q = q.astype(jnp.float32) + eps
    m = jnp.log(0.5 * (p + q))
    kl_pm = jnp.sum(p * (jnp.log(p) - m)) / batch
    kl_qm = jnp.sum(q * (jnp.log(q) - m)) / batch
    return 0.5 * (kl_pm + kl_qm)


if __name__ == "__main__":
    key = jax.random.PRNGKey(0)
    k1, k2, k3, k4 = jax.random.split(key, 4)

    # Small NCHW-like inputs; turn them into probability-ish tensors.
    shape = (2, 4, 16, 16)
    p = jax.nn.softmax(jax.random.normal(k1, shape, dtype=jnp.float32), axis=-1)
    q = jax.nn.softmax(jax.random.normal(k2, shape, dtype=jnp.float32), axis=-1)

    out = js_divergence(p, q)
    out = jax.block_until_ready(out)
    ref = _js_reference(p, q)
    assert jnp.allclose(out, ref, rtol=1e-5, atol=1e-5), (out, ref)

    # Also exercise the ragged (non-128-divisible) fallback + in-kernel mask.
    shape2 = (2, 3, 5)
    p2 = jax.nn.softmax(jax.random.normal(k3, shape2, dtype=jnp.float32), axis=-1)
    q2 = jax.nn.softmax(jax.random.normal(k4, shape2, dtype=jnp.float32), axis=-1)
    out2 = jax.block_until_ready(js_divergence(p2, q2))
    ref2 = _js_reference(p2, q2)
    assert jnp.allclose(out2, ref2, rtol=1e-5, atol=1e-5), (out2, ref2)

    print("KERNEL_OK")
</pallas_src>

<mosaic_0001>
module attributes {stable_mosaic.version = 11 : i64} {
  func.func @_js_kernel(%arg0: i32, %arg1: memref<8x1024xf32, #tpu.memory_space<vmem>>, %arg2: memref<8x1024xf32, #tpu.memory_space<vmem>>, %arg3: memref<1x1x1024xf32, #tpu.memory_space<vmem>>) attributes {dimension_semantics = [#tpu.dimension_semantics<parallel>], iteration_bounds = array<i64: 1>, scalar_prefetch = 0 : i64, scratch_operands = 0 : i64, tpu.core_type = #tpu.core_type<tc>, window_params = [{transform_indices = @transform_0, window_bounds = array<i64: 8, 1024>}, {transform_indices = @transform_1, window_bounds = array<i64: 8, 1024>}, {transform_indices = @transform_2, window_bounds = array<i64: 1, 1, 1024>}]} {
    %c8192_i32 = arith.constant 8192 : i32
    %0 = arith.muli %arg0, %c8192_i32 : i32
    %1 = tpu.iota {dimensions = array<i32: 0>} : vector<8x1024xi32>
    %2 = tpu.iota {dimensions = array<i32: 1>} : vector<8x1024xi32>
    %c1024_i32 = arith.constant 1024 : i32
    %3 = vector.broadcast %c1024_i32 : i32 to vector<8x1024xi32>
    %4 = arith.muli %1, %3 : vector<8x1024xi32>
    %5 = vector.broadcast %0 : i32 to vector<8x1024xi32>
    %6 = arith.addi %5, %4 : vector<8x1024xi32>
    %7 = arith.addi %6, %2 : vector<8x1024xi32>
    %c2048_i32 = arith.constant 2048 : i32
    %8 = vector.broadcast %c2048_i32 : i32 to vector<8x1024xi32>
    %9 = arith.cmpi slt, %7, %8 : vector<8x1024xi32>
    %c0 = arith.constant 0 : index
    %c0_0 = arith.constant 0 : index
    %10 = vector.load %arg1[%c0, %c0_0] : memref<8x1024xf32, #tpu.memory_space<vmem>>, vector<8x1024xf32>
    %cst = arith.constant 9.99999993E-9 : f32
    %11 = vector.broadcast %cst : f32 to vector<8x1024xf32>
    %12 = arith.addf %10, %11 : vector<8x1024xf32>
    %c0_1 = arith.constant 0 : index
    %c0_2 = arith.constant 0 : index
    %13 = vector.load %arg2[%c0_1, %c0_2] : memref<8x1024xf32, #tpu.memory_space<vmem>>, vector<8x1024xf32>
    %cst_3 = arith.constant 9.99999993E-9 : f32
    %14 = vector.broadcast %cst_3 : f32 to vector<8x1024xf32>
    %15 = arith.addf %13, %14 : vector<8x1024xf32>
    %16 = arith.addf %12, %15 : vector<8x1024xf32>
    %17 = tpu.reciprocal %16 : vector<8x1024xf32> -> vector<8x1024xf32>
    %cst_4 = arith.constant 2.000000e+00 : f32
    %18 = vector.broadcast %cst_4 : f32 to vector<8x1024xf32>
    %19 = arith.mulf %17, %18 : vector<8x1024xf32>
    %20 = arith.mulf %12, %19 : vector<8x1024xf32>
    %21 = math.log %20 : vector<8x1024xf32>
    %22 = arith.mulf %12, %21 : vector<8x1024xf32>
    %23 = arith.mulf %15, %19 : vector<8x1024xf32>
    %24 = math.log %23 : vector<8x1024xf32>
    %25 = arith.mulf %15, %24 : vector<8x1024xf32>
    %26 = arith.addf %22, %25 : vector<8x1024xf32>
    %cst_5 = arith.constant 0.000000e+00 : f32
    %27 = vector.broadcast %cst_5 : f32 to vector<8x1024xf32>
    %28 = arith.select %9, %26, %27 : vector<8x1024xi1>, vector<8x1024xf32>
    %cst_6 = arith.constant dense<0.000000e+00> : vector<1024xf32>
    %29 = vector.multi_reduction <add>, %28, %cst_6 [0] : vector<8x1024xf32> to vector<1024xf32>
    %30 = vector.shape_cast %29 : vector<1024xf32> to vector<1x1024xf32>
    %31 = vector.shape_cast %30 : vector<1x1024xf32> to vector<1x1x1024xf32>
    %c0_7 = arith.constant 0 : index
    %c0_8 = arith.constant 0 : index
    %c0_9 = arith.constant 0 : index
    %32 = vector.load %arg3[%c0_7, %c0_8, %c0_9] : memref<1x1x1024xf32, #tpu.memory_space<vmem>>, vector<1x1x1024xf32>
    tpu.vector_store %arg3[%c0_7, %c0_8, %c0_9], %31 {strides = array<i32>} : memref<1x1x1024xf32, #tpu.memory_space<vmem>>, vector<1x1x1024xf32>,
    return
  }
  func.func @transform_0(%arg0: i32) -> (i32, i32) {
    %c0_i32 = arith.constant 0 : i32
    %c0_i32_0 = arith.constant 0 : i32
    return %arg0, %c0_i32 : i32, i32
  }
  func.func @transform_1(%arg0: i32) -> (i32, i32) {
    %c0_i32 = arith.constant 0 : i32
    %c0_i32_0 = arith.constant 0 : i32
    return %arg0, %c0_i32 : i32, i32
  }
  func.func @transform_2(%arg0: i32) -> (i32, i32, i32) {
    %c0_i32 = arith.constant 0 : i32
    %c0_i32_0 = arith.constant 0 : i32
    %c0_i32_1 = arith.constant 0 : i32
    return %arg0, %c0_i32, %c0_i32_0 : i32, i32, i32
  }
}

</mosaic_0001>

<llo_original>
// kernel: tpu_custom_call.1
$region0: #{tpu_custom_call.1}
  #allocation0 [shape = 'u32[]', space=smem, size = 0x4, offset = 0x4, fixed_abs, tag = 'smem constant byte address 0x4 - core index']
  #allocation1 [shape = 'u32[144,128]{1,0:T(1,128)}', space=vmem, size = 0x12000, scoped, tag = 'internal scratch']
  %s0 = inlined_call_operand.hbm [shape: f32[2,1024], index: 0, kind: input, shape index: {}]
  %s1 = inlined_call_operand.hbm [shape: f32[2,1024], index: 1, kind: input, shape index: {}]
  %s2 = inlined_call_operand.hbm [shape: f32[1,1,1024], index: 2, kind: output, shape index: {}]
  %s3 = sld [smem:[#allocation0]]
  $region26: #{tpu_custom_call.1} parent=0
    _
  %s5 = ssub.s32 1, %s3
  %s6 = scalar_select 0, %s5, %s3
  $region1: #{tpu_custom_call.1} parent=0
    #allocation2 [shape = 'u8[32768]{0}', space=vmem, size = 0x8000, scoped, tag = 'input window, operand 0, single buffered']
    #allocation3 [shape = 's32[1]{0}', space=sflag, size = 0x4, scoped, tag = 'scoped memory for tpu_custom_call.1']
    #allocation4 [shape = 's32[1]{0}', space=sflag, size = 0x4, scoped, tag = 'scoped memory for tpu_custom_call.1']
    #allocation5 [shape = 'u8[32768]{0}', space=vmem, size = 0x8000, scoped, tag = 'input window, operand 1, single buffered']
    #allocation6 [shape = 's32[1]{0}', space=sflag, size = 0x4, scoped, tag = 'scoped memory for tpu_custom_call.1']
    #allocation7 [shape = 'u8[4096]{0}', space=vmem, size = 0x1000, scoped, tag = 'output window, operand 0, single buffered']
    %7 = vsyncpa [#allocation3], 0
    %8 = vsyncpa [#allocation6], 0
    %9 = vsyncpa [#allocation4], 0
    // Predicated region
    $region2: #{tpu_custom_call.1} parent=1 // pred_check
      _
    $region3: #{tpu_custom_call.1} parent=1 // pred_check_branch
      %11 = sbr.rel (0) target = $region5
    $region4: #{tpu_custom_call.1} parent=1 // pred_region
      %s13 = ssub.s32 1024, 256
      %14 = vsyncadd [#allocation3], %s13
      %s15 = sshll.u32 [#allocation2], 4
      %s16 = int_to_ptr.vmem [resolvable:$true] %s15
      %21 = dma.hbm_to_vmem [thread:$0]  %s0, 256, %s16, [#allocation3], 256, 256, 16
    $region5: #{tpu_custom_call.1} parent=1 // pred_fallthru
      _
    // Predicated region
    $region6: #{tpu_custom_call.1} parent=1 // pred_check
      _
    $region7: #{tpu_custom_call.1} parent=1 // pred_check_branch
      %23 = sbr.rel (0) target = $region9
    $region8: #{tpu_custom_call.1} parent=1 // pred_region
      %s25 = ssub.s32 1024, 256
      %26 = vsyncadd [#allocation6], %s25
      %s27 = sshll.u32 [#allocation5], 4
      %s28 = int_to_ptr.vmem [resolvable:$true] %s27
      %33 = dma.hbm_to_vmem [thread:$0]  %s1, 256, %s28, [#allocation6], 256, 256, 16
    $region9: #{tpu_custom_call.1} parent=1 // pred_fallthru
      _
    // Predicated region
    $region10: #{tpu_custom_call.1} parent=1 // pred_check
      _
    $region11: #{tpu_custom_call.1} parent=1 // pred_check_branch
      %35 = sbr.rel (0) target = $region13
    $region12: #{tpu_custom_call.1} parent=1 // pred_region
      %36 = dma.done [#allocation3], 1024
    $region13: #{tpu_custom_call.1} parent=1 // pred_fallthru
      _
    // Predicated region
    $region14: #{tpu_custom_call.1} parent=1 // pred_check
      _
    $region15: #{tpu_custom_call.1} parent=1 // pred_check_branch
      %38 = sbr.rel (0) target = $region17
    $region16: #{tpu_custom_call.1} parent=1 // pred_region
      %39 = dma.done [#allocation6], 1024
    $region17: #{tpu_custom_call.1} parent=1 // pred_fallthru
      _
    %s40 = smul.u32 0, 8192
    %v41 = vlaneseq
    %v42 = vshrl.u32 %v41, 7
    %v43 = vlaneseq
    %v44 = vand.u32 %v43, 127
    %v45 = vadd.s32 %v44, 128
    %v46 = vadd.s32 %v44, 256
    %v47 = vadd.s32 %v44, 384
    %v48 = vadd.s32 %v44, 512
    %v49 = vadd.s32 %v44, 640
    %v50 = vadd.s32 %v44, 768
    %v51 = vadd.s32 %v44, 896
    %v52 = vmul.u32 %v42, 1024
    %v53 = vstv %s40
    %v54 = vadd.s32 %v53, %v52
    %v55 = vadd.s32 %v54, %v44
    %v56 = vadd.s32 %v54, %v45
    %v57 = vadd.s32 %v54, %v46
    %v58 = vadd.s32 %v54, %v47
    %v59 = vadd.s32 %v54, %v48
    %v60 = vadd.s32 %v54, %v49
    %v61 = vadd.s32 %v54, %v50
    %v62 = vadd.s32 %v54, %v51
    %vm63 = vcmp.lt.s32.totalorder %v55, 2048
    %vm64 = vcmp.lt.s32.totalorder %v56, 2048
    %vm65 = vcmp.lt.s32.totalorder %v57, 2048
    %vm66 = vcmp.lt.s32.totalorder %v58, 2048
    %vm67 = vcmp.lt.s32.totalorder %v59, 2048
    %vm68 = vcmp.lt.s32.totalorder %v60, 2048
    %vm69 = vcmp.lt.s32.totalorder %v61, 2048
    %vm70 = vcmp.lt.s32.totalorder %v62, 2048
    %v71 = vld [vmem:[#allocation2] sm:$0xff]
    %v72 = vld [vmem:[#allocation2 + $0x8] sm:$0xff]
    %v73 = vld [vmem:[#allocation2 + $0x10] sm:$0xff]
    %v74 = vld [vmem:[#allocation2 + $0x18] sm:$0xff]
    %v75 = vld [vmem:[#allocation2 + $0x20] sm:$0xff]
    %v76 = vld [vmem:[#allocation2 + $0x28] sm:$0xff]
    %v77 = vld [vmem:[#allocation2 + $0x30] sm:$0xff]
    %v78 = vld [vmem:[#allocation2 + $0x38] sm:$0xff]
    %v79 = vadd.f32 %v71, 1e-08
    %v80 = vadd.f32 %v72, 1e-08
    %v81 = vadd.f32 %v73, 1e-08
    %v82 = vadd.f32 %v74, 1e-08
    %v83 = vadd.f32 %v75, 1e-08
    %v84 = vadd.f32 %v76, 1e-08
    %v85 = vadd.f32 %v77, 1e-08
    %v86 = vadd.f32 %v78, 1e-08
    %v87 = vld [vmem:[#allocation5] sm:$0xff]
    %v88 = vld [vmem:[#allocation5 + $0x8] sm:$0xff]
    %v89 = vld [vmem:[#allocation5 + $0x10] sm:$0xff]
    %v90 = vld [vmem:[#allocation5 + $0x18] sm:$0xff]
    %v91 = vld [vmem:[#allocation5 + $0x20] sm:$0xff]
    %v92 = vld [vmem:[#allocation5 + $0x28] sm:$0xff]
    %v93 = vld [vmem:[#allocation5 + $0x30] sm:$0xff]
    %v94 = vld [vmem:[#allocation5 + $0x38] sm:$0xff]
    %v95 = vadd.f32 %v87, 1e-08
    %v96 = vadd.f32 %v88, 1e-08
    %v97 = vadd.f32 %v89, 1e-08
    %v98 = vadd.f32 %v90, 1e-08
    %v99 = vadd.f32 %v91, 1e-08
    %v100 = vadd.f32 %v92, 1e-08
    %v101 = vadd.f32 %v93, 1e-08
    %v102 = vadd.f32 %v94, 1e-08
    %v103 = vadd.f32 %v79, %v95
    %v104 = vadd.f32 %v80, %v96
    %v105 = vadd.f32 %v81, %v97
    %v106 = vadd.f32 %v82, %v98
    %v107 = vadd.f32 %v83, %v99
    %v108 = vadd.f32 %v84, %v100
    %v109 = vadd.f32 %v85, %v101
    %v110 = vadd.f32 %v86, %v102
    %v111 = vrcp.pop %v103
    %v112 = vrcp.pop %v104
    %v113 = vrcp.pop %v105
    %v114 = vrcp.pop %v106
    %v115 = vrcp.pop %v107
    %v116 = vrcp.pop %v108
    %v117 = vrcp.pop %v109
    %v118 = vrcp.pop %v110
    %v119 = vmul.f32 %v111, 2.0
    %v120 = vmul.f32 %v112, 2.0
    %v121 = vmul.f32 %v113, 2.0
    %v122 = vmul.f32 %v114, 2.0
    %v123 = vmul.f32 %v115, 2.0
    %v124 = vmul.f32 %v116, 2.0
    %v125 = vmul.f32 %v117, 2.0
    %v126 = vmul.f32 %v118, 2.0
    %v127 = vmul.f32 %v79, %v119
    %v128 = vmul.f32 %v80, %v120
    %v129 = vmul.f32 %v81, %v121
    %v130 = vmul.f32 %v82, %v122
    %v131 = vmul.f32 %v83, %v123
    %v132 = vmul.f32 %v84, %v124
    %v133 = vmul.f32 %v85, %v125
    %v134 = vmul.f32 %v86, %v126
    %v135 = vlog2.pop %v127
    %v136 = vmul.f32 %v135, 0.6931472
    %v137 = vlog2.pop %v128
    %v138 = vmul.f32 %v137, 0.6931472
    %v139 = vlog2.pop %v129
    %v140 = vmul.f32 %v139, 0.6931472
    %v141 = vlog2.pop %v130
    %v142 = vmul.f32 %v141, 0.6931472
    %v143 = vlog2.pop %v131
    %v144 = vmul.f32 %v143, 0.6931472
    %v145 = vlog2.pop %v132
    %v146 = vmul.f32 %v145, 0.6931472
    %v147 = vlog2.pop %v133
    %v148 = vmul.f32 %v147, 0.6931472
    %v149 = vlog2.pop %v134
    %v150 = vmul.f32 %v149, 0.6931472
    %v151 = vmul.f32 %v79, %v136
    %v152 = vmul.f32 %v80, %v138
    %v153 = vmul.f32 %v81, %v140
    %v154 = vmul.f32 %v82, %v142
    %v155 = vmul.f32 %v83, %v144
    %v156 = vmul.f32 %v84, %v146
    %v157 = vmul.f32 %v85, %v148
    %v158 = vmul.f32 %v86, %v150
    %v159 = vmul.f32 %v95, %v119
    %v160 = vmul.f32 %v96, %v120
    %v161 = vmul.f32 %v97, %v121
    %v162 = vmul.f32 %v98, %v122
    %v163 = vmul.f32 %v99, %v123
    %v164 = vmul.f32 %v100, %v124
    %v165 = vmul.f32 %v101, %v125
    %v166 = vmul.f32 %v102, %v126
    %v167 = vlog2.pop %v159
    %v168 = vmul.f32 %v167, 0.6931472
    %v169 = vlog2.pop %v160
    %v170 = vmul.f32 %v169, 0.6931472
    %v171 = vlog2.pop %v161
    %v172 = vmul.f32 %v171, 0.6931472
    %v173 = vlog2.pop %v162
    %v174 = vmul.f32 %v173, 0.6931472
    %v175 = vlog2.pop %v163
    %v176 = vmul.f32 %v175, 0.6931472
    %v177 = vlog2.pop %v164
    %v178 = vmul.f32 %v177, 0.6931472
    %v179 = vlog2.pop %v165
    %v180 = vmul.f32 %v179, 0.6931472
    %v181 = vlog2.pop %v166
    %v182 = vmul.f32 %v181, 0.6931472
    %v183 = vmul.f32 %v95, %v168
    %v184 = vmul.f32 %v96, %v170
    %v185 = vmul.f32 %v97, %v172
    %v186 = vmul.f32 %v98, %v174
    %v187 = vmul.f32 %v99, %v176
    %v188 = vmul.f32 %v100, %v178
    %v189 = vmul.f32 %v101, %v180
    %v190 = vmul.f32 %v102, %v182
    %v191 = vadd.f32 %v151, %v183
    %v192 = vadd.f32 %v152, %v184
    %v193 = vadd.f32 %v153, %v185
    %v194 = vadd.f32 %v154, %v186
    %v195 = vadd.f32 %v155, %v187
    %v196 = vadd.f32 %v156, %v188
    %v197 = vadd.f32 %v157, %v189
    %v198 = vadd.f32 %v158, %v190
    %v207 = vcombine.low %v191, %v193
    %v208 = vcombine.high %v191, %v193
    %v209 = vcombine.low %v195, %v197
    %v210 = vcombine.high %v195, %v197
    %v212 = vunpack.c.l.s4 1983009808
    %v213 = vunpack.c.0.s8 %v212
    %v214 = vlaneseq
    %v215 = vshrl.u32 %v214, 7
    %v216 = vsub.s32 %v213, %v215
    %v217 = vrot.slane %v207, %v216
    %v219 = vunpack.c.l.s4 1983009808
    %v220 = vunpack.c.0.s8 %v219
    %v221 = vlaneseq
    %v222 = vshrl.u32 %v221, 7
    %v223 = vsub.s32 %v220, %v222
    %v224 = vrot.slane %v208, %v223
    %v226 = vunpack.c.l.s4 1983009808
    %v227 = vunpack.c.0.s8 %v226
    %v228 = vlaneseq
    %v229 = vshrl.u32 %v228, 7
    %v230 = vsub.s32 %v227, %v229
    %v231 = vrot.slane %v209, %v230
    %v233 = vunpack.c.l.s4 1983009808
    %v234 = vunpack.c.0.s8 %v233
    %v235 = vlaneseq
    %v236 = vshrl.u32 %v235, 7
    %v237 = vsub.s32 %v234, %v236
    %v238 = vrot.slane %v210, %v237
    %v239 = vcombine.low %v217, %v231
    %v240 = vcombine.high %v217, %v231
    %v241 = vcombine.low %v224, %v238
    %v242 = vcombine.high %v224, %v238
    %v243 = vcombine.low %v192, %v194
    %v244 = vcombine.high %v192, %v194
    %v245 = vcombine.low %v196, %v198
    %v246 = vcombine.high %v196, %v198
    %v248 = vunpack.c.l.s4 1983009808
    %v249 = vunpack.c.0.s8 %v248
    %v250 = vlaneseq
    %v251 = vshrl.u32 %v250, 7
    %v252 = vsub.s32 %v249, %v251
    %v253 = vrot.slane %v243, %v252
    %v255 = vunpack.c.l.s4 1983009808
    %v256 = vunpack.c.0.s8 %v255
    %v257 = vlaneseq
    %v258 = vshrl.u32 %v257, 7
    %v259 = vsub.s32 %v256, %v258
    %v260 = vrot.slane %v244, %v259
    %v262 = vunpack.c.l.s4 1983009808
    %v263 = vunpack.c.0.s8 %v262
    %v264 = vlaneseq
    %v265 = vshrl.u32 %v264, 7
    %v266 = vsub.s32 %v263, %v265
    %v267 = vrot.slane %v245, %v266
    %v269 = vunpack.c.l.s4 1983009808
    %v270 = vunpack.c.0.s8 %v269
    %v271 = vlaneseq
    %v272 = vshrl.u32 %v271, 7
    %v273 = vsub.s32 %v270, %v272
    %v274 = vrot.slane %v246, %v273
    %v275 = vcombine.low %v253, %v267
    %v276 = vcombine.high %v253, %v267
    %v277 = vcombine.low %v260, %v274
    %v278 = vcombine.high %v260, %v274
    %v287 = vsel %vm63, %v239, 0.0
    %v288 = vsel %vm64, %v240, 0.0
    %v289 = vsel %vm65, %v241, 0.0
    %v290 = vsel %vm66, %v242, 0.0
    %v291 = vsel %vm67, %v275, 0.0
    %v292 = vsel %vm68, %v276, 0.0
    %v293 = vsel %vm69, %v277, 0.0
    %v294 = vsel %vm70, %v278, 0.0
    %v295 = vrot.slane %v287, 4
    %v296 = vadd.f32 %v287, %v295
    %v297 = vrot.slane %v296, 2
    %v298 = vadd.f32 %v296, %v297
    %v299 = vrot.slane %v298, 1
    %v300 = vadd.f32 %v298, %v299
    %v301 = vrot.slane %v288, 4
    %v302 = vadd.f32 %v288, %v301
    %v303 = vrot.slane %v302, 2
    %v304 = vadd.f32 %v302, %v303
    %v305 = vrot.slane %v304, 1
    %v306 = vadd.f32 %v304, %v305
    %v307 = vrot.slane %v289, 4
    %v308 = vadd.f32 %v289, %v307
    %v309 = vrot.slane %v308, 2
    %v310 = vadd.f32 %v308, %v309
    %v311 = vrot.slane %v310, 1
    %v312 = vadd.f32 %v310, %v311
    %v313 = vrot.slane %v290, 4
    %v314 = vadd.f32 %v290, %v313
    %v315 = vrot.slane %v314, 2
    %v316 = vadd.f32 %v314, %v315
    %v317 = vrot.slane %v316, 1
    %v318 = vadd.f32 %v316, %v317
    %v319 = vrot.slane %v291, 4
    %v320 = vadd.f32 %v291, %v319
    %v321 = vrot.slane %v320, 2
    %v322 = vadd.f32 %v320, %v321
    %v323 = vrot.slane %v322, 1
    %v324 = vadd.f32 %v322, %v323
    %v325 = vrot.slane %v292, 4
    %v326 = vadd.f32 %v292, %v325
    %v327 = vrot.slane %v326, 2
    %v328 = vadd.f32 %v326, %v327
    %v329 = vrot.slane %v328, 1
    %v330 = vadd.f32 %v328, %v329
    %v331 = vrot.slane %v293, 4
    %v332 = vadd.f32 %v293, %v331
    %v333 = vrot.slane %v332, 2
    %v334 = vadd.f32 %v332, %v333
    %v335 = vrot.slane %v334, 1
    %v336 = vadd.f32 %v334, %v335
    %v337 = vrot.slane %v294, 4
    %v338 = vadd.f32 %v294, %v337
    %v339 = vrot.slane %v338, 2
    %v340 = vadd.f32 %v338, %v339
    %v341 = vrot.slane %v340, 1
    %v342 = vadd.f32 %v340, %v341
    %v351 = vcombine.low %v300, %v306
    %v352 = vcombine.low %v312, %v318
    %v353 = vcombine.low %v324, %v330
    %v354 = vcombine.low %v336, %v342
    %v356 = vunpack.c.l.s4 1966171168
    %v357 = vunpack.c.0.s8 %v356
    %v358 = vlaneseq
    %v359 = vshrl.u32 %v358, 7
    %v360 = vsub.s32 %v357, %v359
    %v361 = vrot.slane %v351, %v360
    %v363 = vunpack.c.l.s4 1966171168
    %v364 = vunpack.c.0.s8 %v363
    %v365 = vlaneseq
    %v366 = vshrl.u32 %v365, 7
    %v367 = vsub.s32 %v364, %v366
    %v368 = vrot.slane %v352, %v367
    %v370 = vunpack.c.l.s4 1966171168
    %v371 = vunpack.c.0.s8 %v370
    %v372 = vlaneseq
    %v373 = vshrl.u32 %v372, 7
    %v374 = vsub.s32 %v371, %v373
    %v375 = vrot.slane %v353, %v374
    %v377 = vunpack.c.l.s4 1966171168
    %v378 = vunpack.c.0.s8 %v377
    %v379 = vlaneseq
    %v380 = vshrl.u32 %v379, 7
    %v381 = vsub.s32 %v378, %v380
    %v382 = vrot.slane %v354, %v381
    %v383 = vcombine.low %v361, %v368
    %v384 = vcombine.low %v375, %v382
    %v386 = vunpack.c.l.s4 1966171168
    %v387 = vunpack.c.0.s8 %v386
    %v388 = vlaneseq
    %v389 = vshrl.u32 %v388, 7
    %v390 = vsub.s32 %v387, %v389
    %v391 = vrot.slane %v383, %v390
    %v393 = vunpack.c.l.s4 1966171168
    %v394 = vunpack.c.0.s8 %v393
    %v395 = vlaneseq
    %v396 = vshrl.u32 %v395, 7
    %v397 = vsub.s32 %v394, %v396
    %v398 = vrot.slane %v384, %v397
    %v399 = vcombine.low %v391, %v398
    %401 = vst [vmem:[#allocation7] sm:$0xff] %v399
    // Predicated region
    $region18: #{tpu_custom_call.1} parent=1 // pred_check
      _
    $region19: #{tpu_custom_call.1} parent=1 // pred_check_branch
      %403 = sbr.rel (0) target = $region21
    $region20: #{tpu_custom_call.1} parent=1 // pred_region
      %s405 = ssub.s32 128, 128
      %406 = vsyncadd [#allocation4], %s405
      %s408 = sshll.u32 [#allocation7], 4
      %s409 = int_to_ptr.vmem [resolvable:$true] %s408
      %411 = dma.vmem_to_hbm [thread:$0]  %s409, 128, %s2, [#allocation4]
    $region21: #{tpu_custom_call.1} parent=1 // pred_fallthru
      _
    // Predicated region
    $region22: #{tpu_custom_call.1} parent=1 // pred_check
      _
    $region23: #{tpu_custom_call.1} parent=1 // pred_check_branch
      %413 = sbr.rel (0) target = $region25
    $region24: #{tpu_custom_call.1} parent=1 // pred_region
      %414 = dma.done [#allocation4], 128
    $region25: #{tpu_custom_call.1} parent=1 // pred_fallthru
      _
    %415 = vsyncpa [#allocation3], 1
    %416 = vsyncpa [#allocation6], 1
    %417 = vsyncpa [#allocation4], 1

</llo_original>
